<compile_context>
chip_gen: v7x
topology: tpu7x:2x2x1
jax: 0.10.0
libtpu: 0.0.40
codegen_flags: <defaults>
</compile_context>

<pallas_src>
import jax
import jax.numpy as jnp
from jax.experimental import pallas as pl
from jax.experimental.pallas import tpu as pltpu

NUM_PARAMS = 10
DIM = 10
LANE = 128


def _mymodule_kernel(params_ref, x_ref, out_ref):
    # params_ref: (10, 10, 10) VMEM, x_ref: (10, Np) VMEM, out_ref: (10, Np) VMEM
    p = params_ref[...]            # single load of all parameters
    x = x_ref[...]                 # already f32, no cast needed

    # Fused per-step matrices: Q[i] = P[i//2] + P[i]  (cheap VPU adds,
    # off the critical path).
    mats = [p[i // 2] + p[i] for i in range(NUM_PARAMS)]

    # Pairwise tree product preserving application order:
    #   M = Q[9] @ Q[8] @ ... @ Q[0]
    # mats[j] is applied before mats[j+1], so combine as mats[j+1] @ mats[j].
    while len(mats) > 1:
        nxt = [
            jnp.dot(mats[j + 1], mats[j], preferred_element_type=jnp.float32)
            for j in range(0, len(mats) - 1, 2)
        ]
        if len(mats) % 2 == 1:
            nxt.append(mats[-1])
        mats = nxt
    m = mats[0]                    # (10, 10) full chain product

    # Single matmul against the activation.
    out_ref[...] = jnp.dot(m, x, preferred_element_type=jnp.float32).astype(
        out_ref.dtype)


def mymodule_forward(params, x):
    """params: (10, 10, 10) f32, x: (10, N) f32 -> (10, N) f32."""
    d, n = x.shape
    assert d == DIM

    # Lane-dense last dim: pad N up to a multiple of 128 so loads/stores
    # use full vregs (unmasked vst) instead of ~6%-occupancy masked stores.
    n_pad = max(LANE, ((n + LANE - 1) // LANE) * LANE)
    x_p = x if n == n_pad else jnp.pad(x, ((0, 0), (0, n_pad - n)))

    out = pl.pallas_call(
        _mymodule_kernel,
        out_shape=jax.ShapeDtypeStruct((DIM, n_pad), x.dtype),
        in_specs=[
            pl.BlockSpec(memory_space=pltpu.MemorySpace.VMEM),
            pl.BlockSpec(memory_space=pltpu.MemorySpace.VMEM),
        ],
        out_specs=pl.BlockSpec(memory_space=pltpu.MemorySpace.VMEM),
    )(params, x_p)

    return out[:, :n] if n != n_pad else out


def reference_forward(params, x):
    # Pure-JAX reference matching the torch module exactly
    # (two matmuls + add per step, sequential).
    for i in range(NUM_PARAMS):
        x = params[i // 2] @ x + params[i] @ x
    return x


if __name__ == "__main__":
    key = jax.random.PRNGKey(0)
    kp, kx = jax.random.split(key)

    # Deterministic "torch.randn"-style init for the 10 (10,10) parameters.
    params = jax.random.normal(kp, (NUM_PARAMS, DIM, DIM), dtype=jnp.float32)
    # Input x: (10, N) so that params[i].mm(x) is valid.  Small N = 8.
    x = jax.random.normal(kx, (DIM, 8), dtype=jnp.float32)

    out = mymodule_forward(params, x)
    out = jax.block_until_ready(out)

    ref = reference_forward(params, x)
    # The kernel reassociates the matmul chain (Q-fusion + tree product),
    # which changes rounding order; with ~1e5-magnitude activations a
    # relative comparison is the right check.
    assert out.shape == ref.shape
    assert jnp.allclose(out, ref, rtol=1e-3, atol=1e-2), "mismatch vs reference"

    print("KERNEL_OK")
</pallas_src>

<mosaic_0001>
module attributes {stable_mosaic.version = 11 : i64} {
  func.func @_mymodule_kernel(%arg0: memref<10x10x10xf32, #tpu.memory_space<vmem>>, %arg1: memref<10x128xf32, #tpu.memory_space<vmem>>, %arg2: memref<10x128xf32, #tpu.memory_space<vmem>>) attributes {dimension_semantics = [], scalar_prefetch = 0 : i64, scratch_operands = 0 : i64, tpu.core_type = #tpu.core_type<tc>} {
    %c0 = arith.constant 0 : index
    %c0_0 = arith.constant 0 : index
    %c0_1 = arith.constant 0 : index
    %0 = vector.load %arg0[%c0, %c0_0, %c0_1] : memref<10x10x10xf32, #tpu.memory_space<vmem>>, vector<10x10x10xf32>
    %c0_2 = arith.constant 0 : index
    %c0_3 = arith.constant 0 : index
    %1 = vector.load %arg1[%c0_2, %c0_3] : memref<10x128xf32, #tpu.memory_space<vmem>>, vector<10x128xf32>
    %2 = vector.extract_strided_slice %0 {offsets = [0, 0, 0], sizes = [1, 10, 10], strides = [1, 1, 1]} : vector<10x10x10xf32> to vector<1x10x10xf32>
    %3 = vector.shape_cast %2 : vector<1x10x10xf32> to vector<10x10xf32>
    %4 = vector.extract_strided_slice %0 {offsets = [0, 0, 0], sizes = [1, 10, 10], strides = [1, 1, 1]} : vector<10x10x10xf32> to vector<1x10x10xf32>
    %5 = vector.shape_cast %4 : vector<1x10x10xf32> to vector<10x10xf32>
    %6 = arith.addf %3, %5 : vector<10x10xf32>
    %7 = vector.extract_strided_slice %0 {offsets = [0, 0, 0], sizes = [1, 10, 10], strides = [1, 1, 1]} : vector<10x10x10xf32> to vector<1x10x10xf32>
    %8 = vector.shape_cast %7 : vector<1x10x10xf32> to vector<10x10xf32>
    %9 = vector.extract_strided_slice %0 {offsets = [1, 0, 0], sizes = [1, 10, 10], strides = [1, 1, 1]} : vector<10x10x10xf32> to vector<1x10x10xf32>
    %10 = vector.shape_cast %9 : vector<1x10x10xf32> to vector<10x10xf32>
    %11 = arith.addf %8, %10 : vector<10x10xf32>
    %12 = vector.extract_strided_slice %0 {offsets = [1, 0, 0], sizes = [1, 10, 10], strides = [1, 1, 1]} : vector<10x10x10xf32> to vector<1x10x10xf32>
    %13 = vector.shape_cast %12 : vector<1x10x10xf32> to vector<10x10xf32>
    %14 = vector.extract_strided_slice %0 {offsets = [2, 0, 0], sizes = [1, 10, 10], strides = [1, 1, 1]} : vector<10x10x10xf32> to vector<1x10x10xf32>
    %15 = vector.shape_cast %14 : vector<1x10x10xf32> to vector<10x10xf32>
    %16 = arith.addf %13, %15 : vector<10x10xf32>
    %17 = vector.extract_strided_slice %0 {offsets = [1, 0, 0], sizes = [1, 10, 10], strides = [1, 1, 1]} : vector<10x10x10xf32> to vector<1x10x10xf32>
    %18 = vector.shape_cast %17 : vector<1x10x10xf32> to vector<10x10xf32>
    %19 = vector.extract_strided_slice %0 {offsets = [3, 0, 0], sizes = [1, 10, 10], strides = [1, 1, 1]} : vector<10x10x10xf32> to vector<1x10x10xf32>
    %20 = vector.shape_cast %19 : vector<1x10x10xf32> to vector<10x10xf32>
    %21 = arith.addf %18, %20 : vector<10x10xf32>
    %22 = vector.extract_strided_slice %0 {offsets = [2, 0, 0], sizes = [1, 10, 10], strides = [1, 1, 1]} : vector<10x10x10xf32> to vector<1x10x10xf32>
    %23 = vector.shape_cast %22 : vector<1x10x10xf32> to vector<10x10xf32>
    %24 = vector.extract_strided_slice %0 {offsets = [4, 0, 0], sizes = [1, 10, 10], strides = [1, 1, 1]} : vector<10x10x10xf32> to vector<1x10x10xf32>
    %25 = vector.shape_cast %24 : vector<1x10x10xf32> to vector<10x10xf32>
    %26 = arith.addf %23, %25 : vector<10x10xf32>
    %27 = vector.extract_strided_slice %0 {offsets = [2, 0, 0], sizes = [1, 10, 10], strides = [1, 1, 1]} : vector<10x10x10xf32> to vector<1x10x10xf32>
    %28 = vector.shape_cast %27 : vector<1x10x10xf32> to vector<10x10xf32>
    %29 = vector.extract_strided_slice %0 {offsets = [5, 0, 0], sizes = [1, 10, 10], strides = [1, 1, 1]} : vector<10x10x10xf32> to vector<1x10x10xf32>
    %30 = vector.shape_cast %29 : vector<1x10x10xf32> to vector<10x10xf32>
    %31 = arith.addf %28, %30 : vector<10x10xf32>
    %32 = vector.extract_strided_slice %0 {offsets = [3, 0, 0], sizes = [1, 10, 10], strides = [1, 1, 1]} : vector<10x10x10xf32> to vector<1x10x10xf32>
    %33 = vector.shape_cast %32 : vector<1x10x10xf32> to vector<10x10xf32>
    %34 = vector.extract_strided_slice %0 {offsets = [6, 0, 0], sizes = [1, 10, 10], strides = [1, 1, 1]} : vector<10x10x10xf32> to vector<1x10x10xf32>
    %35 = vector.shape_cast %34 : vector<1x10x10xf32> to vector<10x10xf32>
    %36 = arith.addf %33, %35 : vector<10x10xf32>
    %37 = vector.extract_strided_slice %0 {offsets = [3, 0, 0], sizes = [1, 10, 10], strides = [1, 1, 1]} : vector<10x10x10xf32> to vector<1x10x10xf32>
    %38 = vector.shape_cast %37 : vector<1x10x10xf32> to vector<10x10xf32>
    %39 = vector.extract_strided_slice %0 {offsets = [7, 0, 0], sizes = [1, 10, 10], strides = [1, 1, 1]} : vector<10x10x10xf32> to vector<1x10x10xf32>
    %40 = vector.shape_cast %39 : vector<1x10x10xf32> to vector<10x10xf32>
    %41 = arith.addf %38, %40 : vector<10x10xf32>
    %42 = vector.extract_strided_slice %0 {offsets = [4, 0, 0], sizes = [1, 10, 10], strides = [1, 1, 1]} : vector<10x10x10xf32> to vector<1x10x10xf32>
    %43 = vector.shape_cast %42 : vector<1x10x10xf32> to vector<10x10xf32>
    %44 = vector.extract_strided_slice %0 {offsets = [8, 0, 0], sizes = [1, 10, 10], strides = [1, 1, 1]} : vector<10x10x10xf32> to vector<1x10x10xf32>
    %45 = vector.shape_cast %44 : vector<1x10x10xf32> to vector<10x10xf32>
    %46 = arith.addf %43, %45 : vector<10x10xf32>
    %47 = vector.extract_strided_slice %0 {offsets = [4, 0, 0], sizes = [1, 10, 10], strides = [1, 1, 1]} : vector<10x10x10xf32> to vector<1x10x10xf32>
    %48 = vector.shape_cast %47 : vector<1x10x10xf32> to vector<10x10xf32>
    %49 = vector.extract_strided_slice %0 {offsets = [9, 0, 0], sizes = [1, 10, 10], strides = [1, 1, 1]} : vector<10x10x10xf32> to vector<1x10x10xf32>
    %50 = vector.shape_cast %49 : vector<1x10x10xf32> to vector<10x10xf32>
    %51 = arith.addf %48, %50 : vector<10x10xf32>
    %cst = arith.constant dense<0.000000e+00> : vector<10x10xf32>
    %52 = tpu.matmul %11, %6, %cst {dimension_numbers = #tpu.dot_dimension_numbers<[1], [0], [0], [1], [0, 0, 1, 1], [], []>} : vector<10x10xf32>, vector<10x10xf32>, vector<10x10xf32> -> vector<10x10xf32>
    %cst_4 = arith.constant dense<0.000000e+00> : vector<10x10xf32>
    %53 = tpu.matmul %21, %16, %cst_4 {dimension_numbers = #tpu.dot_dimension_numbers<[1], [0], [0], [1], [0, 0, 1, 1], [], []>} : vector<10x10xf32>, vector<10x10xf32>, vector<10x10xf32> -> vector<10x10xf32>
    %cst_5 = arith.constant dense<0.000000e+00> : vector<10x10xf32>
    %54 = tpu.matmul %31, %26, %cst_5 {dimension_numbers = #tpu.dot_dimension_numbers<[1], [0], [0], [1], [0, 0, 1, 1], [], []>} : vector<10x10xf32>, vector<10x10xf32>, vector<10x10xf32> -> vector<10x10xf32>
    %cst_6 = arith.constant dense<0.000000e+00> : vector<10x10xf32>
    %55 = tpu.matmul %41, %36, %cst_6 {dimension_numbers = #tpu.dot_dimension_numbers<[1], [0], [0], [1], [0, 0, 1, 1], [], []>} : vector<10x10xf32>, vector<10x10xf32>, vector<10x10xf32> -> vector<10x10xf32>
    %cst_7 = arith.constant dense<0.000000e+00> : vector<10x10xf32>
    %56 = tpu.matmul %51, %46, %cst_7 {dimension_numbers = #tpu.dot_dimension_numbers<[1], [0], [0], [1], [0, 0, 1, 1], [], []>} : vector<10x10xf32>, vector<10x10xf32>, vector<10x10xf32> -> vector<10x10xf32>
    %cst_8 = arith.constant dense<0.000000e+00> : vector<10x10xf32>
    %57 = tpu.matmul %53, %52, %cst_8 {dimension_numbers = #tpu.dot_dimension_numbers<[1], [0], [0], [1], [0, 0, 1, 1], [], []>} : vector<10x10xf32>, vector<10x10xf32>, vector<10x10xf32> -> vector<10x10xf32>
    %cst_9 = arith.constant dense<0.000000e+00> : vector<10x10xf32>
    %58 = tpu.matmul %55, %54, %cst_9 {dimension_numbers = #tpu.dot_dimension_numbers<[1], [0], [0], [1], [0, 0, 1, 1], [], []>} : vector<10x10xf32>, vector<10x10xf32>, vector<10x10xf32> -> vector<10x10xf32>
    %cst_10 = arith.constant dense<0.000000e+00> : vector<10x10xf32>
    %59 = tpu.matmul %58, %57, %cst_10 {dimension_numbers = #tpu.dot_dimension_numbers<[1], [0], [0], [1], [0, 0, 1, 1], [], []>} : vector<10x10xf32>, vector<10x10xf32>, vector<10x10xf32> -> vector<10x10xf32>
    %cst_11 = arith.constant dense<0.000000e+00> : vector<10x10xf32>
    %60 = tpu.matmul %56, %59, %cst_11 {dimension_numbers = #tpu.dot_dimension_numbers<[1], [0], [0], [1], [0, 0, 1, 1], [], []>} : vector<10x10xf32>, vector<10x10xf32>, vector<10x10xf32> -> vector<10x10xf32>
    %cst_12 = arith.constant dense<0.000000e+00> : vector<10x128xf32>
    %61 = tpu.matmul %60, %1, %cst_12 {dimension_numbers = #tpu.dot_dimension_numbers<[1], [0], [0], [1], [0, 0, 1, 1], [], []>} : vector<10x10xf32>, vector<10x128xf32>, vector<10x128xf32> -> vector<10x128xf32>
    %c0_13 = arith.constant 0 : index
    %c0_14 = arith.constant 0 : index
    %62 = vector.load %arg2[%c0_13, %c0_14] : memref<10x128xf32, #tpu.memory_space<vmem>>, vector<10x128xf32>
    tpu.vector_store %arg2[%c0_13, %c0_14], %61 {strides = array<i32>} : memref<10x128xf32, #tpu.memory_space<vmem>>, vector<10x128xf32>,
    return
  }
}

</mosaic_0001>

<llo_original>
// kernel: tpu_custom_call.1
$region0: #{tpu_custom_call.1}
  #allocation0 [shape = 'u32[]', space=smem, size = 0x4, offset = 0x4, fixed_abs, tag = 'smem constant byte address 0x4 - core index']
  #allocation1 [shape = 'u32[144,128]{1,0:T(1,128)}', space=vmem, size = 0x12000, scoped, tag = 'internal scratch']
  %s0 = inlined_call_operand.hbm [shape: f32[10,10,10], index: 0, kind: input, shape index: {}]
  %s1 = inlined_call_operand.hbm [shape: f32[10,128], index: 1, kind: input, shape index: {}]
  %s2 = inlined_call_operand.hbm [shape: f32[10,128], index: 2, kind: output, shape index: {}]
  %s3 = sld [smem:[#allocation0]]
  $region26: #{tpu_custom_call.1} parent=0
    _
  %s5 = ssub.s32 1, %s3
  %s6 = scalar_select 0, %s5, %s3
  $region1: #{tpu_custom_call.1} parent=0
    #allocation2 [shape = 'u8[81920]{0}', space=vmem, size = 0x14000, scoped, tag = 'input window, operand 0, single buffered']
    #allocation3 [shape = 's32[1]{0}', space=sflag, size = 0x4, scoped, tag = 'scoped memory for tpu_custom_call.1']
    #allocation4 [shape = 's32[1]{0}', space=sflag, size = 0x4, scoped, tag = 'scoped memory for tpu_custom_call.1']
    #allocation5 [shape = 'u8[8192]{0}', space=vmem, size = 0x2000, scoped, tag = 'input window, operand 1, single buffered']
    #allocation6 [shape = 's32[1]{0}', space=sflag, size = 0x4, scoped, tag = 'scoped memory for tpu_custom_call.1']
    #allocation7 [shape = 'u8[8192]{0}', space=vmem, size = 0x2000, scoped, tag = 'output window, operand 0, single buffered']
    %7 = vsyncpa [#allocation3], 0
    %8 = vsyncpa [#allocation6], 0
    %9 = vsyncpa [#allocation4], 0
    // Predicated region
    $region2: #{tpu_custom_call.1} parent=1 // pred_check
      _
    $region3: #{tpu_custom_call.1} parent=1 // pred_check_branch
      %11 = sbr.rel (0) target = $region5
    $region4: #{tpu_custom_call.1} parent=1 // pred_region
      %s13 = ssub.s32 2560, 2560
      %14 = vsyncadd [#allocation3], %s13
      %s15 = sshll.u32 [#allocation2], 4
      %s16 = int_to_ptr.vmem [resolvable:$true] %s15
      %21 = dma.hbm_to_vmem [thread:$0]  %s0, 2560, %s16, [#allocation3], 128, 128, 8
    $region5: #{tpu_custom_call.1} parent=1 // pred_fallthru
      _
    // Predicated region
    $region6: #{tpu_custom_call.1} parent=1 // pred_check
      _
    $region7: #{tpu_custom_call.1} parent=1 // pred_check_branch
      %23 = sbr.rel (0) target = $region9
    $region8: #{tpu_custom_call.1} parent=1 // pred_region
      %s25 = ssub.s32 256, 256
      %26 = vsyncadd [#allocation6], %s25
      %s27 = sshll.u32 [#allocation5], 4
      %s28 = int_to_ptr.vmem [resolvable:$true] %s27
      %33 = dma.hbm_to_vmem [thread:$0]  %s1, 256, %s28, [#allocation6], 128, 128, 8
    $region9: #{tpu_custom_call.1} parent=1 // pred_fallthru
      _
    // Predicated region
    $region10: #{tpu_custom_call.1} parent=1 // pred_check
      _
    $region11: #{tpu_custom_call.1} parent=1 // pred_check_branch
      %35 = sbr.rel (0) target = $region13
    $region12: #{tpu_custom_call.1} parent=1 // pred_region
      %36 = dma.done [#allocation3], 2560
    $region13: #{tpu_custom_call.1} parent=1 // pred_fallthru
      _
    // Predicated region
    $region14: #{tpu_custom_call.1} parent=1 // pred_check
      _
    $region15: #{tpu_custom_call.1} parent=1 // pred_check_branch
      %38 = sbr.rel (0) target = $region17
    $region16: #{tpu_custom_call.1} parent=1 // pred_region
      %39 = dma.done [#allocation6], 256
    $region17: #{tpu_custom_call.1} parent=1 // pred_fallthru
      _
    %v40 = vld [vmem:[#allocation2] sm:$0xff]
    %v41 = vld [vmem:[#allocation2 + $0x8] sm:$0x3]
    %v42 = vld [vmem:[#allocation2 + $0x10] sm:$0xff]
    %v43 = vld [vmem:[#allocation2 + $0x18] sm:$0x3]
    %v44 = vld [vmem:[#allocation2 + $0x20] sm:$0xff]
    %v45 = vld [vmem:[#allocation2 + $0x28] sm:$0x3]
    %v46 = vld [vmem:[#allocation2 + $0x30] sm:$0xff]
    %v47 = vld [vmem:[#allocation2 + $0x38] sm:$0x3]
    %v48 = vld [vmem:[#allocation2 + $0x40] sm:$0xff]
    %v49 = vld [vmem:[#allocation2 + $0x48] sm:$0x3]
    %v50 = vld [vmem:[#allocation2 + $0x50] sm:$0xff]
    %v51 = vld [vmem:[#allocation2 + $0x58] sm:$0x3]
    %v52 = vld [vmem:[#allocation2 + $0x60] sm:$0xff]
    %v53 = vld [vmem:[#allocation2 + $0x68] sm:$0x3]
    %v54 = vld [vmem:[#allocation2 + $0x70] sm:$0xff]
    %v55 = vld [vmem:[#allocation2 + $0x78] sm:$0x3]
    %v56 = vld [vmem:[#allocation2 + $0x80] sm:$0xff]
    %v57 = vld [vmem:[#allocation2 + $0x88] sm:$0x3]
    %v58 = vld [vmem:[#allocation2 + $0x90] sm:$0xff]
    %v59 = vld [vmem:[#allocation2 + $0x98] sm:$0x3]
    %v60 = vld [vmem:[#allocation5] sm:$0xff]
    %v61 = vld [vmem:[#allocation5 + $0x8] sm:$0x3]
    %v62 = vadd.f32 %v40, %v40
    %v63 = vadd.f32 %v41, %v41
    %v64 = vadd.f32 %v40, %v42
    %v65 = vadd.f32 %v41, %v43
    %v66 = vadd.f32 %v42, %v44
    %v67 = vadd.f32 %v43, %v45
    %v68 = vadd.f32 %v42, %v46
    %v69 = vadd.f32 %v43, %v47
    %v70 = vadd.f32 %v44, %v48
    %v71 = vadd.f32 %v45, %v49
    %v72 = vadd.f32 %v44, %v50
    %v73 = vadd.f32 %v45, %v51
    %v74 = vadd.f32 %v46, %v52
    %v75 = vadd.f32 %v47, %v53
    %v76 = vadd.f32 %v46, %v54
    %v77 = vadd.f32 %v47, %v55
    %v78 = vadd.f32 %v48, %v56
    %v79 = vadd.f32 %v49, %v57
    %v80 = vadd.f32 %v48, %v58
    %v81 = vadd.f32 %v49, %v59
    %vm82 = vcmask 80896
    %v84 = vsel %vm82, %v64, 0
    %v87 = vsel %vm82, %v65, 0
    %vm89 = vcmask 1041408
    %v91 = vsel %vm89, %v63, 0
    %93 = vmatprep.subr.mxu0 0.0
    %94 = vmatpush1.msra.mxu0 %v62
    %95 = vmatprep.subr.mxu0 0.0
    %96 = vmatpush1.msra.mxu0 %v91
    %97 = vmatprep.subr.mxu0 0.0
    %98 = vmatpush1.msra.mxu0 0.0
    %99 = vmatprep.subr.mxu0 0.0
    %100 = vmatpush1.msra.mxu0 0.0
    %101 = vmatprep.subr.mxu0 0.0
    %102 = vmatpush1.msra.mxu0 0.0
    %103 = vmatprep.subr.mxu0 0.0
    %104 = vmatpush1.msra.mxu0 0.0
    %105 = vmatprep.subr.mxu0 0.0
    %106 = vmatpush1.msra.mxu0 0.0
    %107 = vmatprep.subr.mxu0 0.0
    %108 = vmatpush1.msra.mxu0 0.0
    %109 = vmatprep.subr.mxu0 0.0
    %110 = vmatpush1.msra.mxu0 0.0
    %111 = vmatprep.subr.mxu0 0.0
    %112 = vmatpush1.msra.mxu0 0.0
    %113 = vmatprep.subr.mxu0 0.0
    %114 = vmatpush1.msra.mxu0 0.0
    %115 = vmatprep.subr.mxu0 0.0
    %116 = vmatpush1.msra.mxu0 0.0
    %117 = vmatprep.subr.mxu0 0.0
    %118 = vmatpush1.msra.mxu0 0.0
    %119 = vmatprep.subr.mxu0 0.0
    %120 = vmatpush1.msra.mxu0 0.0
    %121 = vmatprep.subr.mxu0 0.0
    %122 = vmatpush1.msra.mxu0 0.0
    %123 = vmatprep.subr.mxu0 0.0
    %124 = vmatpush1.msra.mxu0 0.0
    %125 = vmatprep.subr.mxu0 0.0
    %126 = vmatpush1.msra.mxu0 0.0
    %127 = vmatprep.subr.mxu0 0.0
    %128 = vmatpush1.msra.mxu0 0.0
    %129 = vmatprep.subr.mxu0 0.0
    %130 = vmatpush1.msra.mxu0 0.0
    %131 = vmatprep.subr.mxu0 0.0
    %132 = vmatpush1.msra.mxu0 0.0
    %133 = vmatprep.subr.mxu0 0.0
    %134 = vmatpush1.msra.mxu0 0.0
    %135 = vmatprep.subr.mxu0 0.0
    %136 = vmatpush1.msra.mxu0 0.0
    %137 = vmatprep.subr.mxu0 0.0
    %138 = vmatpush1.msra.mxu0 0.0
    %139 = vmatprep.subr.mxu0 0.0
    %140 = vmatpush1.msra.mxu0 0.0
    %141 = vmatprep.subr.mxu0 0.0
    %142 = vmatpush1.msra.mxu0 0.0
    %143 = vmatprep.subr.mxu0 0.0
    %144 = vmatpush1.msra.mxu0 0.0
    %145 = vmatprep.subr.mxu0 0.0
    %146 = vmatpush1.msra.mxu0 0.0
    %147 = vmatprep.subr.mxu0 0.0
    %148 = vmatpush1.msra.mxu0 0.0
    %149 = vmatprep.subr.mxu0 0.0
    %150 = vmatpush1.msra.mxu0 0.0
    %151 = vmatprep.subr.mxu0 0.0
    %152 = vmatpush1.msra.mxu0 0.0
    %153 = vmatprep.subr.mxu0 0.0
    %154 = vmatpush1.msra.mxu0 0.0
    %155 = vmatprep.subr.mxu0 0.0
    %156 = vmatpush1.msra.mxu0 0.0
    %157 = vmatprep.mubr.f32.mxu0 0.0
    %158 = vmatmul.mubr.f32.gmra.mrb[0].mxu0 %v84
    %v159 = vpop.f32.mrb[0].mxu0
    %v160 = vadd.f32 0.0, %v159
    %v161 = vpop.f32.mrb[0].mxu0
    %162 = vmatprep.mubr.f32.mxu0 0.0
    %163 = vmatmul.mubr.f32.gmra.mrb[0].mxu0 %v87
    %v164 = vpop.f32.mrb[0].mxu0
    %v165 = vadd.f32 0.0, %v164
    %v166 = vpop.f32.mrb[0].mxu0
    %167 = vdwg.mxu0
    %v169 = vsel %vm82, %v68, 0
    %v172 = vsel %vm82, %v69, 0
    %v175 = vsel %vm89, %v67, 0
    %177 = vmatprep.subr.mxu0 0.0
    %178 = vmatpush1.msra.mxu0 %v66
    %179 = vmatprep.subr.mxu0 0.0
    %180 = vmatpush1.msra.mxu0 %v175
    %181 = vmatprep.subr.mxu0 0.0
    %182 = vmatpush1.msra.mxu0 0.0
    %183 = vmatprep.subr.mxu0 0.0
    %184 = vmatpush1.msra.mxu0 0.0
    %185 = vmatprep.subr.mxu0 0.0
    %186 = vmatpush1.msra.mxu0 0.0
    %187 = vmatprep.subr.mxu0 0.0
    %188 = vmatpush1.msra.mxu0 0.0
    %189 = vmatprep.subr.mxu0 0.0
    %190 = vmatpush1.msra.mxu0 0.0
    %191 = vmatprep.subr.mxu0 0.0
    %192 = vmatpush1.msra.mxu0 0.0
    %193 = vmatprep.subr.mxu0 0.0
    %194 = vmatpush1.msra.mxu0 0.0
    %195 = vmatprep.subr.mxu0 0.0
    %196 = vmatpush1.msra.mxu0 0.0
    %197 = vmatprep.subr.mxu0 0.0
    %198 = vmatpush1.msra.mxu0 0.0
    %199 = vmatprep.subr.mxu0 0.0
    %200 = vmatpush1.msra.mxu0 0.0
    %201 = vmatprep.subr.mxu0 0.0
    %202 = vmatpush1.msra.mxu0 0.0
    %203 = vmatprep.subr.mxu0 0.0
    %204 = vmatpush1.msra.mxu0 0.0
    %205 = vmatprep.subr.mxu0 0.0
    %206 = vmatpush1.msra.mxu0 0.0
    %207 = vmatprep.subr.mxu0 0.0
    %208 = vmatpush1.msra.mxu0 0.0
    %209 = vmatprep.subr.mxu0 0.0
    %210 = vmatpush1.msra.mxu0 0.0
    %211 = vmatprep.subr.mxu0 0.0
    %212 = vmatpush1.msra.mxu0 0.0
    %213 = vmatprep.subr.mxu0 0.0
    %214 = vmatpush1.msra.mxu0 0.0
    %215 = vmatprep.subr.mxu0 0.0
    %216 = vmatpush1.msra.mxu0 0.0
    %217 = vmatprep.subr.mxu0 0.0
    %218 = vmatpush1.msra.mxu0 0.0
    %219 = vmatprep.subr.mxu0 0.0
    %220 = vmatpush1.msra.mxu0 0.0
    %221 = vmatprep.subr.mxu0 0.0
    %222 = vmatpush1.msra.mxu0 0.0
    %223 = vmatprep.subr.mxu0 0.0
    %224 = vmatpush1.msra.mxu0 0.0
    %225 = vmatprep.subr.mxu0 0.0
    %226 = vmatpush1.msra.mxu0 0.0
    %227 = vmatprep.subr.mxu0 0.0
    %228 = vmatpush1.msra.mxu0 0.0
    %229 = vmatprep.subr.mxu0 0.0
    %230 = vmatpush1.msra.mxu0 0.0
    %231 = vmatprep.subr.mxu0 0.0
    %232 = vmatpush1.msra.mxu0 0.0
    %233 = vmatprep.subr.mxu0 0.0
    %234 = vmatpush1.msra.mxu0 0.0
    %235 = vmatprep.subr.mxu0 0.0
    %236 = vmatpush1.msra.mxu0 0.0
    %237 = vmatprep.subr.mxu0 0.0
    %238 = vmatpush1.msra.mxu0 0.0
    %239 = vmatprep.subr.mxu0 0.0
    %240 = vmatpush1.msra.mxu0 0.0
    %241 = vmatprep.mubr.f32.mxu0 0.0
    %242 = vmatmul.mubr.f32.gmra.mrb[0].mxu0 %v169
    %v243 = vpop.f32.mrb[0].mxu0
    %v244 = vadd.f32 0.0, %v243
    %v245 = vpop.f32.mrb[0].mxu0
    %246 = vmatprep.mubr.f32.mxu0 0.0
    %247 = vmatmul.mubr.f32.gmra.mrb[0].mxu0 %v172
    %v248 = vpop.f32.mrb[0].mxu0
    %v249 = vadd.f32 0.0, %v248
    %v250 = vpop.f32.mrb[0].mxu0
    %251 = vdwg.mxu0
    %v253 = vsel %vm82, %v72, 0
    %v256 = vsel %vm82, %v73, 0
    %v259 = vsel %vm89, %v71, 0
    %261 = vmatprep.subr.mxu0 0.0
    %262 = vmatpush1.msra.mxu0 %v70
    %263 = vmatprep.subr.mxu0 0.0
    %264 = vmatpush1.msra.mxu0 %v259
    %265 = vmatprep.subr.mxu0 0.0
    %266 = vmatpush1.msra.mxu0 0.0
    %267 = vmatprep.subr.mxu0 0.0
    %268 = vmatpush1.msra.mxu0 0.0
    %269 = vmatprep.subr.mxu0 0.0
    %270 = vmatpush1.msra.mxu0 0.0
    %271 = vmatprep.subr.mxu0 0.0
    %272 = vmatpush1.msra.mxu0 0.0
    %273 = vmatprep.subr.mxu0 0.0
    %274 = vmatpush1.msra.mxu0 0.0
    %275 = vmatprep.subr.mxu0 0.0
    %276 = vmatpush1.msra.mxu0 0.0
    %277 = vmatprep.subr.mxu0 0.0
    %278 = vmatpush1.msra.mxu0 0.0
    %279 = vmatprep.subr.mxu0 0.0
    %280 = vmatpush1.msra.mxu0 0.0
    %281 = vmatprep.subr.mxu0 0.0
    %282 = vmatpush1.msra.mxu0 0.0
    %283 = vmatprep.subr.mxu0 0.0
    %284 = vmatpush1.msra.mxu0 0.0
    %285 = vmatprep.subr.mxu0 0.0
    %286 = vmatpush1.msra.mxu0 0.0
    %287 = vmatprep.subr.mxu0 0.0
    %288 = vmatpush1.msra.mxu0 0.0
    %289 = vmatprep.subr.mxu0 0.0
    %290 = vmatpush1.msra.mxu0 0.0
    %291 = vmatprep.subr.mxu0 0.0
    %292 = vmatpush1.msra.mxu0 0.0
    %293 = vmatprep.subr.mxu0 0.0
    %294 = vmatpush1.msra.mxu0 0.0
    %295 = vmatprep.subr.mxu0 0.0
    %296 = vmatpush1.msra.mxu0 0.0
    %297 = vmatprep.subr.mxu0 0.0
    %298 = vmatpush1.msra.mxu0 0.0
    %299 = vmatprep.subr.mxu0 0.0
    %300 = vmatpush1.msra.mxu0 0.0
    %301 = vmatprep.subr.mxu0 0.0
    %302 = vmatpush1.msra.mxu0 0.0
    %303 = vmatprep.subr.mxu0 0.0
    %304 = vmatpush1.msra.mxu0 0.0
    %305 = vmatprep.subr.mxu0 0.0
    %306 = vmatpush1.msra.mxu0 0.0
    %307 = vmatprep.subr.mxu0 0.0
    %308 = vmatpush1.msra.mxu0 0.0
    %309 = vmatprep.subr.mxu0 0.0
    %310 = vmatpush1.msra.mxu0 0.0
    %311 = vmatprep.subr.mxu0 0.0
    %312 = vmatpush1.msra.mxu0 0.0
    %313 = vmatprep.subr.mxu0 0.0
    %314 = vmatpush1.msra.mxu0 0.0
    %315 = vmatprep.subr.mxu0 0.0
    %316 = vmatpush1.msra.mxu0 0.0
    %317 = vmatprep.subr.mxu0 0.0
    %318 = vmatpush1.msra.mxu0 0.0
    %319 = vmatprep.subr.mxu0 0.0
    %320 = vmatpush1.msra.mxu0 0.0
    %321 = vmatprep.subr.mxu0 0.0
    %322 = vmatpush1.msra.mxu0 0.0
    %323 = vmatprep.subr.mxu0 0.0
    %324 = vmatpush1.msra.mxu0 0.0
    %325 = vmatprep.mubr.f32.mxu0 0.0
    %326 = vmatmul.mubr.f32.gmra.mrb[0].mxu0 %v253
    %v327 = vpop.f32.mrb[0].mxu0
    %v328 = vadd.f32 0.0, %v327
    %v329 = vpop.f32.mrb[0].mxu0
    %330 = vmatprep.mubr.f32.mxu0 0.0
    %331 = vmatmul.mubr.f32.gmra.mrb[0].mxu0 %v256
    %v332 = vpop.f32.mrb[0].mxu0
    %v333 = vadd.f32 0.0, %v332
    %v334 = vpop.f32.mrb[0].mxu0
    %335 = vdwg.mxu0
    %v337 = vsel %vm82, %v76, 0
    %v340 = vsel %vm82, %v77, 0
    %v343 = vsel %vm89, %v75, 0
    %345 = vmatprep.subr.mxu0 0.0
    %346 = vmatpush1.msra.mxu0 %v74
    %347 = vmatprep.subr.mxu0 0.0
    %348 = vmatpush1.msra.mxu0 %v343
    %349 = vmatprep.subr.mxu0 0.0
    %350 = vmatpush1.msra.mxu0 0.0
    %351 = vmatprep.subr.mxu0 0.0
    %352 = vmatpush1.msra.mxu0 0.0
    %353 = vmatprep.subr.mxu0 0.0
    %354 = vmatpush1.msra.mxu0 0.0
    %355 = vmatprep.subr.mxu0 0.0
    %356 = vmatpush1.msra.mxu0 0.0
    %357 = vmatprep.subr.mxu0 0.0
    %358 = vmatpush1.msra.mxu0 0.0
    %359 = vmatprep.subr.mxu0 0.0
    %360 = vmatpush1.msra.mxu0 0.0
    %361 = vmatprep.subr.mxu0 0.0
    %362 = vmatpush1.msra.mxu0 0.0
    %363 = vmatprep.subr.mxu0 0.0
    %364 = vmatpush1.msra.mxu0 0.0
    %365 = vmatprep.subr.mxu0 0.0
    %366 = vmatpush1.msra.mxu0 0.0
    %367 = vmatprep.subr.mxu0 0.0
    %368 = vmatpush1.msra.mxu0 0.0
    %369 = vmatprep.subr.mxu0 0.0
    %370 = vmatpush1.msra.mxu0 0.0
    %371 = vmatprep.subr.mxu0 0.0
    %372 = vmatpush1.msra.mxu0 0.0
    %373 = vmatprep.subr.mxu0 0.0
    %374 = vmatpush1.msra.mxu0 0.0
    %375 = vmatprep.subr.mxu0 0.0
    %376 = vmatpush1.msra.mxu0 0.0
    %377 = vmatprep.subr.mxu0 0.0
    %378 = vmatpush1.msra.mxu0 0.0
    %379 = vmatprep.subr.mxu0 0.0
    %380 = vmatpush1.msra.mxu0 0.0
    %381 = vmatprep.subr.mxu0 0.0
    %382 = vmatpush1.msra.mxu0 0.0
    %383 = vmatprep.subr.mxu0 0.0
    %384 = vmatpush1.msra.mxu0 0.0
    %385 = vmatprep.subr.mxu0 0.0
    %386 = vmatpush1.msra.mxu0 0.0
    %387 = vmatprep.subr.mxu0 0.0
    %388 = vmatpush1.msra.mxu0 0.0
    %389 = vmatprep.subr.mxu0 0.0
    %390 = vmatpush1.msra.mxu0 0.0
    %391 = vmatprep.subr.mxu0 0.0
    %392 = vmatpush1.msra.mxu0 0.0
    %393 = vmatprep.subr.mxu0 0.0
    %394 = vmatpush1.msra.mxu0 0.0
    %395 = vmatprep.subr.mxu0 0.0
    %396 = vmatpush1.msra.mxu0 0.0
    %397 = vmatprep.subr.mxu0 0.0
    %398 = vmatpush1.msra.mxu0 0.0
    %399 = vmatprep.subr.mxu0 0.0
    %400 = vmatpush1.msra.mxu0 0.0
    %401 = vmatprep.subr.mxu0 0.0
    %402 = vmatpush1.msra.mxu0 0.0
    %403 = vmatprep.subr.mxu0 0.0
    %404 = vmatpush1.msra.mxu0 0.0
    %405 = vmatprep.subr.mxu0 0.0
    %406 = vmatpush1.msra.mxu0 0.0
    %407 = vmatprep.subr.mxu0 0.0
    %408 = vmatpush1.msra.mxu0 0.0
    %409 = vmatprep.mubr.f32.mxu0 0.0
    %410 = vmatmul.mubr.f32.gmra.mrb[0].mxu0 %v337
    %v411 = vpop.f32.mrb[0].mxu0
    %v412 = vadd.f32 0.0, %v411
    %v413 = vpop.f32.mrb[0].mxu0
    %414 = vmatprep.mubr.f32.mxu0 0.0
    %415 = vmatmul.mubr.f32.gmra.mrb[0].mxu0 %v340
    %v416 = vpop.f32.mrb[0].mxu0
    %v417 = vadd.f32 0.0, %v416
    %v418 = vpop.f32.mrb[0].mxu0
    %419 = vdwg.mxu0
    %v421 = vsel %vm82, %v80, 0
    %v424 = vsel %vm82, %v81, 0
    %v427 = vsel %vm89, %v79, 0
    %429 = vmatprep.subr.mxu0 0.0
    %430 = vmatpush1.msra.mxu0 %v78
    %431 = vmatprep.subr.mxu0 0.0
    %432 = vmatpush1.msra.mxu0 %v427
    %433 = vmatprep.subr.mxu0 0.0
    %434 = vmatpush1.msra.mxu0 0.0
    %435 = vmatprep.subr.mxu0 0.0
    %436 = vmatpush1.msra.mxu0 0.0
    %437 = vmatprep.subr.mxu0 0.0
    %438 = vmatpush1.msra.mxu0 0.0
    %439 = vmatprep.subr.mxu0 0.0
    %440 = vmatpush1.msra.mxu0 0.0
    %441 = vmatprep.subr.mxu0 0.0
    %442 = vmatpush1.msra.mxu0 0.0
    %443 = vmatprep.subr.mxu0 0.0
    %444 = vmatpush1.msra.mxu0 0.0
    %445 = vmatprep.subr.mxu0 0.0
    %446 = vmatpush1.msra.mxu0 0.0
    %447 = vmatprep.subr.mxu0 0.0
    %448 = vmatpush1.msra.mxu0 0.0
    %449 = vmatprep.subr.mxu0 0.0
    %450 = vmatpush1.msra.mxu0 0.0
    %451 = vmatprep.subr.mxu0 0.0
    %452 = vmatpush1.msra.mxu0 0.0
    %453 = vmatprep.subr.mxu0 0.0
    %454 = vmatpush1.msra.mxu0 0.0
    %455 = vmatprep.subr.mxu0 0.0
    %456 = vmatpush1.msra.mxu0 0.0
    %457 = vmatprep.subr.mxu0 0.0
    %458 = vmatpush1.msra.mxu0 0.0
    %459 = vmatprep.subr.mxu0 0.0
    %460 = vmatpush1.msra.mxu0 0.0
    %461 = vmatprep.subr.mxu0 0.0
    %462 = vmatpush1.msra.mxu0 0.0
    %463 = vmatprep.subr.mxu0 0.0
    %464 = vmatpush1.msra.mxu0 0.0
    %465 = vmatprep.subr.mxu0 0.0
    %466 = vmatpush1.msra.mxu0 0.0
    %467 = vmatprep.subr.mxu0 0.0
    %468 = vmatpush1.msra.mxu0 0.0
    %469 = vmatprep.subr.mxu0 0.0
    %470 = vmatpush1.msra.mxu0 0.0
    %471 = vmatprep.subr.mxu0 0.0
    %472 = vmatpush1.msra.mxu0 0.0
    %473 = vmatprep.subr.mxu0 0.0
    %474 = vmatpush1.msra.mxu0 0.0
    %475 = vmatprep.subr.mxu0 0.0
    %476 = vmatpush1.msra.mxu0 0.0
    %477 = vmatprep.subr.mxu0 0.0
    %478 = vmatpush1.msra.mxu0 0.0
    %479 = vmatprep.subr.mxu0 0.0
    %480 = vmatpush1.msra.mxu0 0.0
    %481 = vmatprep.subr.mxu0 0.0
    %482 = vmatpush1.msra.mxu0 0.0
    %483 = vmatprep.subr.mxu0 0.0
    %484 = vmatpush1.msra.mxu0 0.0
    %485 = vmatprep.subr.mxu0 0.0
    %486 = vmatpush1.msra.mxu0 0.0
    %487 = vmatprep.subr.mxu0 0.0
    %488 = vmatpush1.msra.mxu0 0.0
    %489 = vmatprep.subr.mxu0 0.0
    %490 = vmatpush1.msra.mxu0 0.0
    %491 = vmatprep.subr.mxu0 0.0
    %492 = vmatpush1.msra.mxu0 0.0
    %493 = vmatprep.mubr.f32.mxu0 0.0
    %494 = vmatmul.mubr.f32.gmra.mrb[0].mxu0 %v421
    %v495 = vpop.f32.mrb[0].mxu0
    %v496 = vadd.f32 0.0, %v495
    %v497 = vpop.f32.mrb[0].mxu0
    %498 = vmatprep.mubr.f32.mxu0 0.0
    %499 = vmatmul.mubr.f32.gmra.mrb[0].mxu0 %v424
    %v500 = vpop.f32.mrb[0].mxu0
    %v501 = vadd.f32 0.0, %v500
    %v502 = vpop.f32.mrb[0].mxu0
    %503 = vdwg.mxu0
    %v505 = vsel %vm82, %v244, 0
    %v508 = vsel %vm82, %v249, 0
    %v511 = vsel %vm89, %v165, 0
    %513 = vmatprep.subr.mxu0 0.0
    %514 = vmatpush1.msra.mxu0 %v160
    %515 = vmatprep.subr.mxu0 0.0
    %516 = vmatpush1.msra.mxu0 %v511
    %517 = vmatprep.subr.mxu0 0.0
    %518 = vmatpush1.msra.mxu0 0.0
    %519 = vmatprep.subr.mxu0 0.0
    %520 = vmatpush1.msra.mxu0 0.0
    %521 = vmatprep.subr.mxu0 0.0
    %522 = vmatpush1.msra.mxu0 0.0
    %523 = vmatprep.subr.mxu0 0.0
    %524 = vmatpush1.msra.mxu0 0.0
    %525 = vmatprep.subr.mxu0 0.0
    %526 = vmatpush1.msra.mxu0 0.0
    %527 = vmatprep.subr.mxu0 0.0
    %528 = vmatpush1.msra.mxu0 0.0
    %529 = vmatprep.subr.mxu0 0.0
    %530 = vmatpush1.msra.mxu0 0.0
    %531 = vmatprep.subr.mxu0 0.0
    %532 = vmatpush1.msra.mxu0 0.0
    %533 = vmatprep.subr.mxu0 0.0
    %534 = vmatpush1.msra.mxu0 0.0
    %535 = vmatprep.subr.mxu0 0.0
    %536 = vmatpush1.msra.mxu0 0.0
    %537 = vmatprep.subr.mxu0 0.0
    %538 = vmatpush1.msra.mxu0 0.0
    %539 = vmatprep.subr.mxu0 0.0
    %540 = vmatpush1.msra.mxu0 0.0
    %541 = vmatprep.subr.mxu0 0.0
    %542 = vmatpush1.msra.mxu0 0.0
    %543 = vmatprep.subr.mxu0 0.0
    %544 = vmatpush1.msra.mxu0 0.0
    %545 = vmatprep.subr.mxu0 0.0
    %546 = vmatpush1.msra.mxu0 0.0
    %547 = vmatprep.subr.mxu0 0.0
    %548 = vmatpush1.msra.mxu0 0.0
    %549 = vmatprep.subr.mxu0 0.0
    %550 = vmatpush1.msra.mxu0 0.0
    %551 = vmatprep.subr.mxu0 0.0
    %552 = vmatpush1.msra.mxu0 0.0
    %553 = vmatprep.subr.mxu0 0.0
    %554 = vmatpush1.msra.mxu0 0.0
    %555 = vmatprep.subr.mxu0 0.0
    %556 = vmatpush1.msra.mxu0 0.0
    %557 = vmatprep.subr.mxu0 0.0
    %558 = vmatpush1.msra.mxu0 0.0
    %559 = vmatprep.subr.mxu0 0.0
    %560 = vmatpush1.msra.mxu0 0.0
    %561 = vmatprep.subr.mxu0 0.0
    %562 = vmatpush1.msra.mxu0 0.0
    %563 = vmatprep.subr.mxu0 0.0
    %564 = vmatpush1.msra.mxu0 0.0
    %565 = vmatprep.subr.mxu0 0.0
    %566 = vmatpush1.msra.mxu0 0.0
    %567 = vmatprep.subr.mxu0 0.0
    %568 = vmatpush1.msra.mxu0 0.0
    %569 = vmatprep.subr.mxu0 0.0
    %570 = vmatpush1.msra.mxu0 0.0
    %571 = vmatprep.subr.mxu0 0.0
    %572 = vmatpush1.msra.mxu0 0.0
    %573 = vmatprep.subr.mxu0 0.0
    %574 = vmatpush1.msra.mxu0 0.0
    %575 = vmatprep.subr.mxu0 0.0
    %576 = vmatpush1.msra.mxu0 0.0
    %577 = vmatprep.mubr.f32.mxu0 0.0
    %578 = vmatmul.mubr.f32.gmra.mrb[0].mxu0 %v505
    %v579 = vpop.f32.mrb[0].mxu0
    %v580 = vadd.f32 0.0, %v579
    %v581 = vpop.f32.mrb[0].mxu0
    %582 = vmatprep.mubr.f32.mxu0 0.0
    %583 = vmatmul.mubr.f32.gmra.mrb[0].mxu0 %v508
    %v584 = vpop.f32.mrb[0].mxu0
    %v585 = vadd.f32 0.0, %v584
    %v586 = vpop.f32.mrb[0].mxu0
    %587 = vdwg.mxu0
    %v589 = vsel %vm82, %v412, 0
    %v592 = vsel %vm82, %v417, 0
    %v595 = vsel %vm89, %v333, 0
    %597 = vmatprep.subr.mxu0 0.0
    %598 = vmatpush1.msra.mxu0 %v328
    %599 = vmatprep.subr.mxu0 0.0
    %600 = vmatpush1.msra.mxu0 %v595
    %601 = vmatprep.subr.mxu0 0.0
    %602 = vmatpush1.msra.mxu0 0.0
    %603 = vmatprep.subr.mxu0 0.0
    %604 = vmatpush1.msra.mxu0 0.0
    %605 = vmatprep.subr.mxu0 0.0
    %606 = vmatpush1.msra.mxu0 0.0
    %607 = vmatprep.subr.mxu0 0.0
    %608 = vmatpush1.msra.mxu0 0.0
    %609 = vmatprep.subr.mxu0 0.0
    %610 = vmatpush1.msra.mxu0 0.0
    %611 = vmatprep.subr.mxu0 0.0
    %612 = vmatpush1.msra.mxu0 0.0
    %613 = vmatprep.subr.mxu0 0.0
    %614 = vmatpush1.msra.mxu0 0.0
    %615 = vmatprep.subr.mxu0 0.0
    %616 = vmatpush1.msra.mxu0 0.0
    %617 = vmatprep.subr.mxu0 0.0
    %618 = vmatpush1.msra.mxu0 0.0
    %619 = vmatprep.subr.mxu0 0.0
    %620 = vmatpush1.msra.mxu0 0.0
    %621 = vmatprep.subr.mxu0 0.0
    %622 = vmatpush1.msra.mxu0 0.0
    %623 = vmatprep.subr.mxu0 0.0
    %624 = vmatpush1.msra.mxu0 0.0
    %625 = vmatprep.subr.mxu0 0.0
    %626 = vmatpush1.msra.mxu0 0.0
    %627 = vmatprep.subr.mxu0 0.0
    %628 = vmatpush1.msra.mxu0 0.0
    %629 = vmatprep.subr.mxu0 0.0
    %630 = vmatpush1.msra.mxu0 0.0
    %631 = vmatprep.subr.mxu0 0.0
    %632 = vmatpush1.msra.mxu0 0.0
    %633 = vmatprep.subr.mxu0 0.0
    %634 = vmatpush1.msra.mxu0 0.0
    %635 = vmatprep.subr.mxu0 0.0
    %636 = vmatpush1.msra.mxu0 0.0
    %637 = vmatprep.subr.mxu0 0.0
    %638 = vmatpush1.msra.mxu0 0.0
    %639 = vmatprep.subr.mxu0 0.0
    %640 = vmatpush1.msra.mxu0 0.0
    %641 = vmatprep.subr.mxu0 0.0
    %642 = vmatpush1.msra.mxu0 0.0
    %643 = vmatprep.subr.mxu0 0.0
    %644 = vmatpush1.msra.mxu0 0.0
    %645 = vmatprep.subr.mxu0 0.0
    %646 = vmatpush1.msra.mxu0 0.0
    %647 = vmatprep.subr.mxu0 0.0
    %648 = vmatpush1.msra.mxu0 0.0
    %649 = vmatprep.subr.mxu0 0.0
    %650 = vmatpush1.msra.mxu0 0.0
    %651 = vmatprep.subr.mxu0 0.0
    %652 = vmatpush1.msra.mxu0 0.0
    %653 = vmatprep.subr.mxu0 0.0
    %654 = vmatpush1.msra.mxu0 0.0
    %655 = vmatprep.subr.mxu0 0.0
    %656 = vmatpush1.msra.mxu0 0.0
    %657 = vmatprep.subr.mxu0 0.0
    %658 = vmatpush1.msra.mxu0 0.0
    %659 = vmatprep.subr.mxu0 0.0
    %660 = vmatpush1.msra.mxu0 0.0
    %661 = vmatprep.mubr.f32.mxu0 0.0
    %662 = vmatmul.mubr.f32.gmra.mrb[0].mxu0 %v589
    %v663 = vpop.f32.mrb[0].mxu0
    %v664 = vadd.f32 0.0, %v663
    %v665 = vpop.f32.mrb[0].mxu0
    %666 = vmatprep.mubr.f32.mxu0 0.0
    %667 = vmatmul.mubr.f32.gmra.mrb[0].mxu0 %v592
    %v668 = vpop.f32.mrb[0].mxu0
    %v669 = vadd.f32 0.0, %v668
    %v670 = vpop.f32.mrb[0].mxu0
    %671 = vdwg.mxu0
    %v673 = vsel %vm82, %v664, 0
    %v676 = vsel %vm82, %v669, 0
    %v679 = vsel %vm89, %v585, 0
    %681 = vmatprep.subr.mxu0 0.0
    %682 = vmatpush1.msra.mxu0 %v580
    %683 = vmatprep.subr.mxu0 0.0
    %684 = vmatpush1.msra.mxu0 %v679
    %685 = vmatprep.subr.mxu0 0.0
    %686 = vmatpush1.msra.mxu0 0.0
    %687 = vmatprep.subr.mxu0 0.0
    %688 = vmatpush1.msra.mxu0 0.0
    %689 = vmatprep.subr.mxu0 0.0
    %690 = vmatpush1.msra.mxu0 0.0
    %691 = vmatprep.subr.mxu0 0.0
    %692 = vmatpush1.msra.mxu0 0.0
    %693 = vmatprep.subr.mxu0 0.0
    %694 = vmatpush1.msra.mxu0 0.0
    %695 = vmatprep.subr.mxu0 0.0
    %696 = vmatpush1.msra.mxu0 0.0
    %697 = vmatprep.subr.mxu0 0.0
    %698 = vmatpush1.msra.mxu0 0.0
    %699 = vmatprep.subr.mxu0 0.0
    %700 = vmatpush1.msra.mxu0 0.0
    %701 = vmatprep.subr.mxu0 0.0
    %702 = vmatpush1.msra.mxu0 0.0
    %703 = vmatprep.subr.mxu0 0.0
    %704 = vmatpush1.msra.mxu0 0.0
    %705 = vmatprep.subr.mxu0 0.0
    %706 = vmatpush1.msra.mxu0 0.0
    %707 = vmatprep.subr.mxu0 0.0
    %708 = vmatpush1.msra.mxu0 0.0
    %709 = vmatprep.subr.mxu0 0.0
    %710 = vmatpush1.msra.mxu0 0.0
    %711 = vmatprep.subr.mxu0 0.0
    %712 = vmatpush1.msra.mxu0 0.0
    %713 = vmatprep.subr.mxu0 0.0
    %714 = vmatpush1.msra.mxu0 0.0
    %715 = vmatprep.subr.mxu0 0.0
    %716 = vmatpush1.msra.mxu0 0.0
    %717 = vmatprep.subr.mxu0 0.0
    %718 = vmatpush1.msra.mxu0 0.0
    %719 = vmatprep.subr.mxu0 0.0
    %720 = vmatpush1.msra.mxu0 0.0
    %721 = vmatprep.subr.mxu0 0.0
    %722 = vmatpush1.msra.mxu0 0.0
    %723 = vmatprep.subr.mxu0 0.0
    %724 = vmatpush1.msra.mxu0 0.0
    %725 = vmatprep.subr.mxu0 0.0
    %726 = vmatpush1.msra.mxu0 0.0
    %727 = vmatprep.subr.mxu0 0.0
    %728 = vmatpush1.msra.mxu0 0.0
    %729 = vmatprep.subr.mxu0 0.0
    %730 = vmatpush1.msra.mxu0 0.0
    %731 = vmatprep.subr.mxu0 0.0
    %732 = vmatpush1.msra.mxu0 0.0
    %733 = vmatprep.subr.mxu0 0.0
    %734 = vmatpush1.msra.mxu0 0.0
    %735 = vmatprep.subr.mxu0 0.0
    %736 = vmatpush1.msra.mxu0 0.0
    %737 = vmatprep.subr.mxu0 0.0
    %738 = vmatpush1.msra.mxu0 0.0
    %739 = vmatprep.subr.mxu0 0.0
    %740 = vmatpush1.msra.mxu0 0.0
    %741 = vmatprep.subr.mxu0 0.0
    %742 = vmatpush1.msra.mxu0 0.0
    %743 = vmatprep.subr.mxu0 0.0
    %744 = vmatpush1.msra.mxu0 0.0
    %745 = vmatprep.mubr.f32.mxu0 0.0
    %746 = vmatmul.mubr.f32.gmra.mrb[0].mxu0 %v673
    %v747 = vpop.f32.mrb[0].mxu0
    %v748 = vadd.f32 0.0, %v747
    %v749 = vpop.f32.mrb[0].mxu0
    %750 = vmatprep.mubr.f32.mxu0 0.0
    %751 = vmatmul.mubr.f32.gmra.mrb[0].mxu0 %v676
    %v752 = vpop.f32.mrb[0].mxu0
    %v753 = vadd.f32 0.0, %v752
    %v754 = vpop.f32.mrb[0].mxu0
    %755 = vdwg.mxu0
    %v757 = vsel %vm82, %v496, 0
    %v760 = vsel %vm82, %v501, 0
    %v763 = vsel %vm89, %v753, 0
    %765 = vmatprep.subr.mxu0 0.0
    %766 = vmatpush1.msra.mxu0 %v748
    %767 = vmatprep.subr.mxu0 0.0
    %768 = vmatpush1.msra.mxu0 %v763
    %769 = vmatprep.subr.mxu0 0.0
    %770 = vmatpush1.msra.mxu0 0.0
    %771 = vmatprep.subr.mxu0 0.0
    %772 = vmatpush1.msra.mxu0 0.0
    %773 = vmatprep.subr.mxu0 0.0
    %774 = vmatpush1.msra.mxu0 0.0
    %775 = vmatprep.subr.mxu0 0.0
    %776 = vmatpush1.msra.mxu0 0.0
    %777 = vmatprep.subr.mxu0 0.0
    %778 = vmatpush1.msra.mxu0 0.0
    %779 = vmatprep.subr.mxu0 0.0
    %780 = vmatpush1.msra.mxu0 0.0
    %781 = vmatprep.subr.mxu0 0.0
    %782 = vmatpush1.msra.mxu0 0.0
    %783 = vmatprep.subr.mxu0 0.0
    %784 = vmatpush1.msra.mxu0 0.0
    %785 = vmatprep.subr.mxu0 0.0
    %786 = vmatpush1.msra.mxu0 0.0
    %787 = vmatprep.subr.mxu0 0.0
    %788 = vmatpush1.msra.mxu0 0.0
    %789 = vmatprep.subr.mxu0 0.0
    %790 = vmatpush1.msra.mxu0 0.0
    %791 = vmatprep.subr.mxu0 0.0
    %792 = vmatpush1.msra.mxu0 0.0
    %793 = vmatprep.subr.mxu0 0.0
    %794 = vmatpush1.msra.mxu0 0.0
    %795 = vmatprep.subr.mxu0 0.0
    %796 = vmatpush1.msra.mxu0 0.0
    %797 = vmatprep.subr.mxu0 0.0
    %798 = vmatpush1.msra.mxu0 0.0
    %799 = vmatprep.subr.mxu0 0.0
    %800 = vmatpush1.msra.mxu0 0.0
    %801 = vmatprep.subr.mxu0 0.0
    %802 = vmatpush1.msra.mxu0 0.0
    %803 = vmatprep.subr.mxu0 0.0
    %804 = vmatpush1.msra.mxu0 0.0
    %805 = vmatprep.subr.mxu0 0.0
    %806 = vmatpush1.msra.mxu0 0.0
    %807 = vmatprep.subr.mxu0 0.0
    %808 = vmatpush1.msra.mxu0 0.0
    %809 = vmatprep.subr.mxu0 0.0
    %810 = vmatpush1.msra.mxu0 0.0
    %811 = vmatprep.subr.mxu0 0.0
    %812 = vmatpush1.msra.mxu0 0.0
    %813 = vmatprep.subr.mxu0 0.0
    %814 = vmatpush1.msra.mxu0 0.0
    %815 = vmatprep.subr.mxu0 0.0
    %816 = vmatpush1.msra.mxu0 0.0
    %817 = vmatprep.subr.mxu0 0.0
    %818 = vmatpush1.msra.mxu0 0.0
    %819 = vmatprep.subr.mxu0 0.0
    %820 = vmatpush1.msra.mxu0 0.0
    %821 = vmatprep.subr.mxu0 0.0
    %822 = vmatpush1.msra.mxu0 0.0
    %823 = vmatprep.subr.mxu0 0.0
    %824 = vmatpush1.msra.mxu0 0.0
    %825 = vmatprep.subr.mxu0 0.0
    %826 = vmatpush1.msra.mxu0 0.0
    %827 = vmatprep.subr.mxu0 0.0
    %828 = vmatpush1.msra.mxu0 0.0
    %829 = vmatprep.mubr.f32.mxu0 0.0
    %830 = vmatmul.mubr.f32.gmra.mrb[0].mxu0 %v757
    %v831 = vpop.f32.mrb[0].mxu0
    %v832 = vadd.f32 0.0, %v831
    %v833 = vpop.f32.mrb[0].mxu0
    %834 = vmatprep.mubr.f32.mxu0 0.0
    %835 = vmatmul.mubr.f32.gmra.mrb[0].mxu0 %v760
    %v836 = vpop.f32.mrb[0].mxu0
    %v837 = vadd.f32 0.0, %v836
    %v838 = vpop.f32.mrb[0].mxu0
    %839 = vdwg.mxu0
    %v841 = vsel %vm82, %v832, 0
    %v844 = vsel %vm82, %v837, 0
    %v847 = vsel %vm89, %v61, 0
    %849 = vmatprep.subr.mxu0 0.0
    %850 = vmatpush1.msra.mxu0 %v60
    %851 = vmatprep.subr.mxu0 0.0
    %852 = vmatpush1.msra.mxu0 %v847
    %853 = vmatprep.subr.mxu0 0.0
    %854 = vmatpush1.msra.mxu0 0.0
    %855 = vmatprep.subr.mxu0 0.0
    %856 = vmatpush1.msra.mxu0 0.0
    %857 = vmatprep.subr.mxu0 0.0
    %858 = vmatpush1.msra.mxu0 0.0
    %859 = vmatprep.subr.mxu0 0.0
    %860 = vmatpush1.msra.mxu0 0.0
    %861 = vmatprep.subr.mxu0 0.0
    %862 = vmatpush1.msra.mxu0 0.0
    %863 = vmatprep.subr.mxu0 0.0
    %864 = vmatpush1.msra.mxu0 0.0
    %865 = vmatprep.subr.mxu0 0.0
    %866 = vmatpush1.msra.mxu0 0.0
    %867 = vmatprep.subr.mxu0 0.0
    %868 = vmatpush1.msra.mxu0 0.0
    %869 = vmatprep.subr.mxu0 0.0
    %870 = vmatpush1.msra.mxu0 0.0
    %871 = vmatprep.subr.mxu0 0.0
    %872 = vmatpush1.msra.mxu0 0.0
    %873 = vmatprep.subr.mxu0 0.0
    %874 = vmatpush1.msra.mxu0 0.0
    %875 = vmatprep.subr.mxu0 0.0
    %876 = vmatpush1.msra.mxu0 0.0
    %877 = vmatprep.subr.mxu0 0.0
    %878 = vmatpush1.msra.mxu0 0.0
    %879 = vmatprep.subr.mxu0 0.0
    %880 = vmatpush1.msra.mxu0 0.0
    %881 = vmatprep.subr.mxu0 0.0
    %882 = vmatpush1.msra.mxu0 0.0
    %883 = vmatprep.subr.mxu0 0.0
    %884 = vmatpush1.msra.mxu0 0.0
    %885 = vmatprep.subr.mxu0 0.0
    %886 = vmatpush1.msra.mxu0 0.0
    %887 = vmatprep.subr.mxu0 0.0
    %888 = vmatpush1.msra.mxu0 0.0
    %889 = vmatprep.subr.mxu0 0.0
    %890 = vmatpush1.msra.mxu0 0.0
    %891 = vmatprep.subr.mxu0 0.0
    %892 = vmatpush1.msra.mxu0 0.0
    %893 = vmatprep.subr.mxu0 0.0
    %894 = vmatpush1.msra.mxu0 0.0
    %895 = vmatprep.subr.mxu0 0.0
    %896 = vmatpush1.msra.mxu0 0.0
    %897 = vmatprep.subr.mxu0 0.0
    %898 = vmatpush1.msra.mxu0 0.0
    %899 = vmatprep.subr.mxu0 0.0
    %900 = vmatpush1.msra.mxu0 0.0
    %901 = vmatprep.subr.mxu0 0.0
    %902 = vmatpush1.msra.mxu0 0.0
    %903 = vmatprep.subr.mxu0 0.0
    %904 = vmatpush1.msra.mxu0 0.0
    %905 = vmatprep.subr.mxu0 0.0
    %906 = vmatpush1.msra.mxu0 0.0
    %907 = vmatprep.subr.mxu0 0.0
    %908 = vmatpush1.msra.mxu0 0.0
    %909 = vmatprep.subr.mxu0 0.0
    %910 = vmatpush1.msra.mxu0 0.0
    %911 = vmatprep.subr.mxu0 0.0
    %912 = vmatpush1.msra.mxu0 0.0
    %913 = vmatprep.mubr.f32.mxu0 0.0
    %914 = vmatmul.mubr.f32.gmra.mrb[0].mxu0 %v841
    %v915 = vpop.f32.mrb[0].mxu0
    %v916 = vadd.f32 0.0, %v915
    %v917 = vpop.f32.mrb[0].mxu0
    %918 = vmatprep.mubr.f32.mxu0 0.0
    %919 = vmatmul.mubr.f32.gmra.mrb[0].mxu0 %v844
    %v920 = vpop.f32.mrb[0].mxu0
    %v921 = vadd.f32 0.0, %v920
    %v922 = vpop.f32.mrb[0].mxu0
    %923 = vdwg.mxu0
    %924 = vst [vmem:[#allocation7] sm:$0xff] %v916
    %925 = vst [vmem:[#allocation7 + $0x8] sm:$0x3] %v921
    // Predicated region
    $region18: #{tpu_custom_call.1} parent=1 // pred_check
      _
    $region19: #{tpu_custom_call.1} parent=1 // pred_check_branch
      %927 = sbr.rel (0) target = $region21
    $region20: #{tpu_custom_call.1} parent=1 // pred_region
      %s929 = ssub.s32 256, 256
      %930 = vsyncadd [#allocation4], %s929
      %s931 = sshll.u32 [#allocation7], 4
      %s932 = int_to_ptr.vmem [resolvable:$true] %s931
      %937 = dma.vmem_to_hbm [thread:$0]  %s932, 256, %s2, [#allocation4], 128, 128, 8
    $region21: #{tpu_custom_call.1} parent=1 // pred_fallthru
      _
    // Predicated region
    $region22: #{tpu_custom_call.1} parent=1 // pred_check
      _
    $region23: #{tpu_custom_call.1} parent=1 // pred_check_branch
      %939 = sbr.rel (0) target = $region25
    $region24: #{tpu_custom_call.1} parent=1 // pred_region
      %940 = dma.done [#allocation4], 256
    $region25: #{tpu_custom_call.1} parent=1 // pred_fallthru
      _
    %941 = vsyncpa [#allocation3], 1
    %942 = vsyncpa [#allocation6], 1
    %943 = vsyncpa [#allocation4], 1

</llo_original>
